<compile_context>
chip_gen: v5e
topology: v5e:2x2
jax: 0.10.0
libtpu: 0.0.40
codegen_flags: <defaults>
</compile_context>

<pallas_src>
import jax
import jax.numpy as jnp
from jax.experimental import pallas as pl
from jax.experimental.pallas import tpu as pltpu


def conv_output_shape(hw, kernel_size, stride, padding=0):
    h = (hw[0] + 2 * padding - kernel_size) // stride + 1
    w = (hw[1] + 2 * padding - kernel_size) // stride + 1
    return (h, w)


_TILE_BUDGET = 12 * 1024 * 1024   # double-buffered in+out block bytes per grid step
_VMEM_LIMIT = 32 * 1024 * 1024    # scoped VMEM request (safe on v5e/v6e/v7x)


def _pick_tiles(B, C, Hout, Wout, chunk, itemsize):
    """Channel tile TC and output-row band TR.

    chunk = input lanes consumed per output row.  Constraints honoured:
      * TC divides C and is full C or a multiple of 8 (sublane rule),
        preferring the dtype packing granularity (8 f32 / 16 bf16 / 32 int8).
      * TR divides Hout and the lane block is either the full fused axis
        (TR == Hout) or a multiple of 128 (lane-dense unmasked stores).
      * double-buffered in+out blocks stay under _TILE_BUDGET so one tile
        choice fits v5e/v6e scoped defaults and v7x's smaller (64 MiB) VMEM.
    """
    pack = 8 * max(1, 4 // max(1, itemsize))       # 8 f32, 16 bf16, 32 int8
    per_row = (chunk + Wout) * itemsize            # bytes / channel / output row

    def fits(tc, tr):
        return 2 * tc * tr * per_row <= _TILE_BUDGET

    if fits(C, 1):
        tc = C
    else:
        divs = [d for d in range(8, C, 8) if C % d == 0 and fits(d, 1)]
        packed = [d for d in divs if d % pack == 0]
        tc = max(packed) if packed else (max(divs) if divs else C)

    cands = [d for d in range(1, Hout + 1)
             if Hout % d == 0 and (d == Hout or (d * Wout) % 128 == 0)]
    fitting = [d for d in cands if fits(tc, d) and d <= 64]  # 64 caps unrolled loop size
    tr = max(fitting) if fitting else min(cands)

    # v7x has 2 TensorCores: keep >= 2 grid steps when it costs nothing.
    if B == 1 and tc == C and tr == Hout:
        halves = [d for d in fitting if d <= Hout // 2]
        if halves:
            tr = max(halves)
    return tc, tr


def _make_pool_kernel(TR, Wout, chunk, taps):
    """Max over `taps` window positions for a band of TR output rows.

    x_ref: (1, TC, TR*chunk)   o_ref: (1, TC, TR*Wout)
    Each tap (offset, stride) selects the Wout lanes of one window position
    for every output column of an output row; jnp.maximum over taps is
    NaN-propagating, matching torch.nn.MaxPool2d.
    """
    def kernel(x_ref, o_ref):
        for q in range(TR):
            base = q * chunk
            m = None
            for off, st in taps:
                idx = (pl.ds(base + off, Wout) if st == 1
                       else pl.ds(base + off, Wout, stride=st))
                t = x_ref[0, :, idx]
                m = t if m is None else jnp.maximum(m, t)
            o_ref[0, :, pl.ds(q * Wout, Wout)] = m
    return kernel


def _pool_pallas_call(xin, Hout, Wout, chunk, taps):
    B, C, _ = xin.shape
    itemsize = jnp.dtype(xin.dtype).itemsize
    TC, TR = _pick_tiles(B, C, Hout, Wout, chunk, itemsize)
    grid = (B, C // TC, Hout // TR)
    out_elems = B * C * Hout * Wout
    in_elems = B * C * Hout * chunk
    return pl.pallas_call(
        _make_pool_kernel(TR, Wout, chunk, taps),
        out_shape=jax.ShapeDtypeStruct((B, C, Hout * Wout), xin.dtype),
        grid=grid,
        in_specs=[pl.BlockSpec((1, TC, TR * chunk), lambda b, c, r: (b, c, r))],
        out_specs=pl.BlockSpec((1, TC, TR * Wout), lambda b, c, r: (b, c, r)),
        compiler_params=pltpu.CompilerParams(
            dimension_semantics=("parallel", "parallel", "parallel"),
            vmem_limit_bytes=_VMEM_LIMIT,
        ),
        cost_estimate=pl.CostEstimate(
            flops=(len(taps) - 1) * out_elems,
            transcendentals=0,
            bytes_accessed=(in_elems + out_elems) * itemsize,
        ),
    )(xin)


_FUSED_OK = None  # lazily probed: does this Mosaic build lower strided lane loads?


def graph_max_pool2d(x, *, input_shape=(16, 16), kernel_size=2, stride=2, padding=0):
    """x: (B, C, H*W) -> (B, C, Hout*Wout), matching nn.MaxPool2d(k, k, 0)."""
    # TODO(synk): only the module's default config (stride == kernel_size,
    # padding == 0, exactly tiled H/W) is implemented; general overlap/padding
    # would need boundary masking in the tap loop.
    global _FUSED_OK
    assert padding == 0 and stride == kernel_size
    B, C, HW = x.shape
    H, W = input_shape
    k = kernel_size
    assert HW == H * W and H % k == 0 and W % k == 0
    Hout, Wout = conv_output_shape(input_shape, k, stride, padding)

    def fused():
        # Full fold: window gather in-kernel, natural layout in and out.
        taps = tuple((dr * W + dc, k) for dr in range(k) for dc in range(k))
        return _pool_pallas_call(x, Hout, Wout, k * W, taps)

    def two_stage():
        # Column pooling as one fused XLA pass (strided slice + max: natural
        # layout in and out, no transpose/relayout), then a contiguous-only
        # Pallas kernel for the row pooling.
        xc = x[..., 0::k]
        for dc in range(1, k):
            xc = jnp.maximum(xc, x[..., dc::k])
        taps = tuple((dr * Wout, 1) for dr in range(k))
        return _pool_pallas_call(xc, Hout, Wout, k * Wout, taps)

    if _FUSED_OK is None:
        try:
            out = jax.block_until_ready(fused())
            _FUSED_OK = True
            return out
        except Exception:
            _FUSED_OK = False
    return fused() if _FUSED_OK else two_stage()


if __name__ == "__main__":
    B, C = 2, 4
    H, W = 16, 16
    key = jax.random.PRNGKey(0)
    x = jax.random.normal(key, (B, C, H * W), dtype=jnp.float32)

    y = graph_max_pool2d(x, input_shape=(H, W), kernel_size=2, stride=2, padding=0)
    y = jax.block_until_ready(y)

    # pure-JAX reference (same semantics as nn.MaxPool2d(2, 2, 0))
    ref = x.reshape(B, C, H // 2, 2, W // 2, 2).max(axis=(3, 5)).reshape(B, C, -1)
    assert y.shape == (B, C, (H // 2) * (W // 2)), y.shape
    assert jnp.allclose(y, ref), "mismatch vs reference max-pool"

    print("KERNEL_OK")
</pallas_src>

<mosaic_0001>
module attributes {stable_mosaic.version = 11 : i64} {
  func.func @kernel(%arg0: i32, %arg1: i32, %arg2: i32, %arg3: memref<1x4x256xf32, #tpu.memory_space<vmem>>, %arg4: memref<1x4x64xf32, #tpu.memory_space<vmem>>) attributes {dimension_semantics = [#tpu.dimension_semantics<parallel>, #tpu.dimension_semantics<parallel>, #tpu.dimension_semantics<parallel>], iteration_bounds = array<i64: 2, 1, 1>, scalar_prefetch = 0 : i64, scratch_operands = 0 : i64, tpu.core_type = #tpu.core_type<tc>, window_params = [{transform_indices = @transform_0, window_bounds = array<i64: 1, 4, 256>}, {transform_indices = @transform_1, window_bounds = array<i64: 1, 4, 64>}]} {
    %c0 = arith.constant 0 : index
    %c0_0 = arith.constant 0 : index
    %c0_1 = arith.constant 0 : index
    %0 = tpu.strided_load %arg3[%c0, %c0_0, %c0_1] {strides = array<i32: 1, 1, 2>} : memref<1x4x256xf32, #tpu.memory_space<vmem>>, vector<1x4x8xf32>
    %1 = vector.shape_cast %0 : vector<1x4x8xf32> to vector<4x8xf32>
    %c0_2 = arith.constant 0 : index
    %c0_3 = arith.constant 0 : index
    %c1 = arith.constant 1 : index
    %2 = tpu.strided_load %arg3[%c0_2, %c0_3, %c1] {strides = array<i32: 1, 1, 2>} : memref<1x4x256xf32, #tpu.memory_space<vmem>>, vector<1x4x8xf32>
    %3 = vector.shape_cast %2 : vector<1x4x8xf32> to vector<4x8xf32>
    %4 = arith.maximumf %1, %3 : vector<4x8xf32>
    %c0_4 = arith.constant 0 : index
    %c0_5 = arith.constant 0 : index
    %c16 = arith.constant 16 : index
    %5 = tpu.strided_load %arg3[%c0_4, %c0_5, %c16] {strides = array<i32: 1, 1, 2>} : memref<1x4x256xf32, #tpu.memory_space<vmem>>, vector<1x4x8xf32>
    %6 = vector.shape_cast %5 : vector<1x4x8xf32> to vector<4x8xf32>
    %7 = arith.maximumf %4, %6 : vector<4x8xf32>
    %c0_6 = arith.constant 0 : index
    %c0_7 = arith.constant 0 : index
    %c17 = arith.constant 17 : index
    %8 = tpu.strided_load %arg3[%c0_6, %c0_7, %c17] {strides = array<i32: 1, 1, 2>} : memref<1x4x256xf32, #tpu.memory_space<vmem>>, vector<1x4x8xf32>
    %9 = vector.shape_cast %8 : vector<1x4x8xf32> to vector<4x8xf32>
    %10 = arith.maximumf %7, %9 : vector<4x8xf32>
    %c0_8 = arith.constant 0 : index
    %c0_9 = arith.constant 0 : index
    %c0_10 = arith.constant 0 : index
    %11 = vector.load %arg4[%c0_8, %c0_9, %c0_10] : memref<1x4x64xf32, #tpu.memory_space<vmem>>, vector<1x4x8xf32>
    %12 = vector.shape_cast %11 : vector<1x4x8xf32> to vector<4x8xf32>
    %13 = vector.shape_cast %10 : vector<4x8xf32> to vector<1x4x8xf32>
    tpu.vector_store %arg4[%c0_8, %c0_9, %c0_10], %13 {strides = array<i32>} : memref<1x4x64xf32, #tpu.memory_space<vmem>>, vector<1x4x8xf32>,
    %c0_11 = arith.constant 0 : index
    %c0_12 = arith.constant 0 : index
    %c32 = arith.constant 32 : index
    %14 = tpu.strided_load %arg3[%c0_11, %c0_12, %c32] {strides = array<i32: 1, 1, 2>} : memref<1x4x256xf32, #tpu.memory_space<vmem>>, vector<1x4x8xf32>
    %15 = vector.shape_cast %14 : vector<1x4x8xf32> to vector<4x8xf32>
    %c0_13 = arith.constant 0 : index
    %c0_14 = arith.constant 0 : index
    %c33 = arith.constant 33 : index
    %16 = tpu.strided_load %arg3[%c0_13, %c0_14, %c33] {strides = array<i32: 1, 1, 2>} : memref<1x4x256xf32, #tpu.memory_space<vmem>>, vector<1x4x8xf32>
    %17 = vector.shape_cast %16 : vector<1x4x8xf32> to vector<4x8xf32>
    %18 = arith.maximumf %15, %17 : vector<4x8xf32>
    %c0_15 = arith.constant 0 : index
    %c0_16 = arith.constant 0 : index
    %c48 = arith.constant 48 : index
    %19 = tpu.strided_load %arg3[%c0_15, %c0_16, %c48] {strides = array<i32: 1, 1, 2>} : memref<1x4x256xf32, #tpu.memory_space<vmem>>, vector<1x4x8xf32>
    %20 = vector.shape_cast %19 : vector<1x4x8xf32> to vector<4x8xf32>
    %21 = arith.maximumf %18, %20 : vector<4x8xf32>
    %c0_17 = arith.constant 0 : index
    %c0_18 = arith.constant 0 : index
    %c49 = arith.constant 49 : index
    %22 = tpu.strided_load %arg3[%c0_17, %c0_18, %c49] {strides = array<i32: 1, 1, 2>} : memref<1x4x256xf32, #tpu.memory_space<vmem>>, vector<1x4x8xf32>
    %23 = vector.shape_cast %22 : vector<1x4x8xf32> to vector<4x8xf32>
    %24 = arith.maximumf %21, %23 : vector<4x8xf32>
    %c0_19 = arith.constant 0 : index
    %c0_20 = arith.constant 0 : index
    %c8 = arith.constant 8 : index
    %25 = vector.load %arg4[%c0_19, %c0_20, %c8] : memref<1x4x64xf32, #tpu.memory_space<vmem>>, vector<1x4x8xf32>
    %26 = vector.shape_cast %25 : vector<1x4x8xf32> to vector<4x8xf32>
    %27 = vector.shape_cast %24 : vector<4x8xf32> to vector<1x4x8xf32>
    tpu.vector_store %arg4[%c0_19, %c0_20, %c8], %27 {strides = array<i32>} : memref<1x4x64xf32, #tpu.memory_space<vmem>>, vector<1x4x8xf32>,
    %c0_21 = arith.constant 0 : index
    %c0_22 = arith.constant 0 : index
    %c64 = arith.constant 64 : index
    %28 = tpu.strided_load %arg3[%c0_21, %c0_22, %c64] {strides = array<i32: 1, 1, 2>} : memref<1x4x256xf32, #tpu.memory_space<vmem>>, vector<1x4x8xf32>
    %29 = vector.shape_cast %28 : vector<1x4x8xf32> to vector<4x8xf32>
    %c0_23 = arith.constant 0 : index
    %c0_24 = arith.constant 0 : index
    %c65 = arith.constant 65 : index
    %30 = tpu.strided_load %arg3[%c0_23, %c0_24, %c65] {strides = array<i32: 1, 1, 2>} : memref<1x4x256xf32, #tpu.memory_space<vmem>>, vector<1x4x8xf32>
    %31 = vector.shape_cast %30 : vector<1x4x8xf32> to vector<4x8xf32>
    %32 = arith.maximumf %29, %31 : vector<4x8xf32>
    %c0_25 = arith.constant 0 : index
    %c0_26 = arith.constant 0 : index
    %c80 = arith.constant 80 : index
    %33 = tpu.strided_load %arg3[%c0_25, %c0_26, %c80] {strides = array<i32: 1, 1, 2>} : memref<1x4x256xf32, #tpu.memory_space<vmem>>, vector<1x4x8xf32>
    %34 = vector.shape_cast %33 : vector<1x4x8xf32> to vector<4x8xf32>
    %35 = arith.maximumf %32, %34 : vector<4x8xf32>
    %c0_27 = arith.constant 0 : index
    %c0_28 = arith.constant 0 : index
    %c81 = arith.constant 81 : index
    %36 = tpu.strided_load %arg3[%c0_27, %c0_28, %c81] {strides = array<i32: 1, 1, 2>} : memref<1x4x256xf32, #tpu.memory_space<vmem>>, vector<1x4x8xf32>
    %37 = vector.shape_cast %36 : vector<1x4x8xf32> to vector<4x8xf32>
    %38 = arith.maximumf %35, %37 : vector<4x8xf32>
    %c0_29 = arith.constant 0 : index
    %c0_30 = arith.constant 0 : index
    %c16_31 = arith.constant 16 : index
    %39 = vector.load %arg4[%c0_29, %c0_30, %c16_31] : memref<1x4x64xf32, #tpu.memory_space<vmem>>, vector<1x4x8xf32>
    %40 = vector.shape_cast %39 : vector<1x4x8xf32> to vector<4x8xf32>
    %41 = vector.shape_cast %38 : vector<4x8xf32> to vector<1x4x8xf32>
    tpu.vector_store %arg4[%c0_29, %c0_30, %c16_31], %41 {strides = array<i32>} : memref<1x4x64xf32, #tpu.memory_space<vmem>>, vector<1x4x8xf32>,
    %c0_32 = arith.constant 0 : index
    %c0_33 = arith.constant 0 : index
    %c96 = arith.constant 96 : index
    %42 = tpu.strided_load %arg3[%c0_32, %c0_33, %c96] {strides = array<i32: 1, 1, 2>} : memref<1x4x256xf32, #tpu.memory_space<vmem>>, vector<1x4x8xf32>
    %43 = vector.shape_cast %42 : vector<1x4x8xf32> to vector<4x8xf32>
    %c0_34 = arith.constant 0 : index
    %c0_35 = arith.constant 0 : index
    %c97 = arith.constant 97 : index
    %44 = tpu.strided_load %arg3[%c0_34, %c0_35, %c97] {strides = array<i32: 1, 1, 2>} : memref<1x4x256xf32, #tpu.memory_space<vmem>>, vector<1x4x8xf32>
    %45 = vector.shape_cast %44 : vector<1x4x8xf32> to vector<4x8xf32>
    %46 = arith.maximumf %43, %45 : vector<4x8xf32>
    %c0_36 = arith.constant 0 : index
    %c0_37 = arith.constant 0 : index
    %c112 = arith.constant 112 : index
    %47 = tpu.strided_load %arg3[%c0_36, %c0_37, %c112] {strides = array<i32: 1, 1, 2>} : memref<1x4x256xf32, #tpu.memory_space<vmem>>, vector<1x4x8xf32>
    %48 = vector.shape_cast %47 : vector<1x4x8xf32> to vector<4x8xf32>
    %49 = arith.maximumf %46, %48 : vector<4x8xf32>
    %c0_38 = arith.constant 0 : index
    %c0_39 = arith.constant 0 : index
    %c113 = arith.constant 113 : index
    %50 = tpu.strided_load %arg3[%c0_38, %c0_39, %c113] {strides = array<i32: 1, 1, 2>} : memref<1x4x256xf32, #tpu.memory_space<vmem>>, vector<1x4x8xf32>
    %51 = vector.shape_cast %50 : vector<1x4x8xf32> to vector<4x8xf32>
    %52 = arith.maximumf %49, %51 : vector<4x8xf32>
    %c0_40 = arith.constant 0 : index
    %c0_41 = arith.constant 0 : index
    %c24 = arith.constant 24 : index
    %53 = vector.load %arg4[%c0_40, %c0_41, %c24] : memref<1x4x64xf32, #tpu.memory_space<vmem>>, vector<1x4x8xf32>
    %54 = vector.shape_cast %53 : vector<1x4x8xf32> to vector<4x8xf32>
    %55 = vector.shape_cast %52 : vector<4x8xf32> to vector<1x4x8xf32>
    tpu.vector_store %arg4[%c0_40, %c0_41, %c24], %55 {strides = array<i32>} : memref<1x4x64xf32, #tpu.memory_space<vmem>>, vector<1x4x8xf32>,
    %c0_42 = arith.constant 0 : index
    %c0_43 = arith.constant 0 : index
    %c128 = arith.constant 128 : index
    %56 = tpu.strided_load %arg3[%c0_42, %c0_43, %c128] {strides = array<i32: 1, 1, 2>} : memref<1x4x256xf32, #tpu.memory_space<vmem>>, vector<1x4x8xf32>
    %57 = vector.shape_cast %56 : vector<1x4x8xf32> to vector<4x8xf32>
    %c0_44 = arith.constant 0 : index
    %c0_45 = arith.constant 0 : index
    %c129 = arith.constant 129 : index
    %58 = tpu.strided_load %arg3[%c0_44, %c0_45, %c129] {strides = array<i32: 1, 1, 2>} : memref<1x4x256xf32, #tpu.memory_space<vmem>>, vector<1x4x8xf32>
    %59 = vector.shape_cast %58 : vector<1x4x8xf32> to vector<4x8xf32>
    %60 = arith.maximumf %57, %59 : vector<4x8xf32>
    %c0_46 = arith.constant 0 : index
    %c0_47 = arith.constant 0 : index
    %c144 = arith.constant 144 : index
    %61 = tpu.strided_load %arg3[%c0_46, %c0_47, %c144] {strides = array<i32: 1, 1, 2>} : memref<1x4x256xf32, #tpu.memory_space<vmem>>, vector<1x4x8xf32>
    %62 = vector.shape_cast %61 : vector<1x4x8xf32> to vector<4x8xf32>
    %63 = arith.maximumf %60, %62 : vector<4x8xf32>
    %c0_48 = arith.constant 0 : index
    %c0_49 = arith.constant 0 : index
    %c145 = arith.constant 145 : index
    %64 = tpu.strided_load %arg3[%c0_48, %c0_49, %c145] {strides = array<i32: 1, 1, 2>} : memref<1x4x256xf32, #tpu.memory_space<vmem>>, vector<1x4x8xf32>
    %65 = vector.shape_cast %64 : vector<1x4x8xf32> to vector<4x8xf32>
    %66 = arith.maximumf %63, %65 : vector<4x8xf32>
    %c0_50 = arith.constant 0 : index
    %c0_51 = arith.constant 0 : index
    %c32_52 = arith.constant 32 : index
    %67 = vector.load %arg4[%c0_50, %c0_51, %c32_52] : memref<1x4x64xf32, #tpu.memory_space<vmem>>, vector<1x4x8xf32>
    %68 = vector.shape_cast %67 : vector<1x4x8xf32> to vector<4x8xf32>
    %69 = vector.shape_cast %66 : vector<4x8xf32> to vector<1x4x8xf32>
    tpu.vector_store %arg4[%c0_50, %c0_51, %c32_52], %69 {strides = array<i32>} : memref<1x4x64xf32, #tpu.memory_space<vmem>>, vector<1x4x8xf32>,
    %c0_53 = arith.constant 0 : index
    %c0_54 = arith.constant 0 : index
    %c160 = arith.constant 160 : index
    %70 = tpu.strided_load %arg3[%c0_53, %c0_54, %c160] {strides = array<i32: 1, 1, 2>} : memref<1x4x256xf32, #tpu.memory_space<vmem>>, vector<1x4x8xf32>
    %71 = vector.shape_cast %70 : vector<1x4x8xf32> to vector<4x8xf32>
    %c0_55 = arith.constant 0 : index
    %c0_56 = arith.constant 0 : index
    %c161 = arith.constant 161 : index
    %72 = tpu.strided_load %arg3[%c0_55, %c0_56, %c161] {strides = array<i32: 1, 1, 2>} : memref<1x4x256xf32, #tpu.memory_space<vmem>>, vector<1x4x8xf32>
    %73 = vector.shape_cast %72 : vector<1x4x8xf32> to vector<4x8xf32>
    %74 = arith.maximumf %71, %73 : vector<4x8xf32>
    %c0_57 = arith.constant 0 : index
    %c0_58 = arith.constant 0 : index
    %c176 = arith.constant 176 : index
    %75 = tpu.strided_load %arg3[%c0_57, %c0_58, %c176] {strides = array<i32: 1, 1, 2>} : memref<1x4x256xf32, #tpu.memory_space<vmem>>, vector<1x4x8xf32>
    %76 = vector.shape_cast %75 : vector<1x4x8xf32> to vector<4x8xf32>
    %77 = arith.maximumf %74, %76 : vector<4x8xf32>
    %c0_59 = arith.constant 0 : index
    %c0_60 = arith.constant 0 : index
    %c177 = arith.constant 177 : index
    %78 = tpu.strided_load %arg3[%c0_59, %c0_60, %c177] {strides = array<i32: 1, 1, 2>} : memref<1x4x256xf32, #tpu.memory_space<vmem>>, vector<1x4x8xf32>
    %79 = vector.shape_cast %78 : vector<1x4x8xf32> to vector<4x8xf32>
    %80 = arith.maximumf %77, %79 : vector<4x8xf32>
    %c0_61 = arith.constant 0 : index
    %c0_62 = arith.constant 0 : index
    %c40 = arith.constant 40 : index
    %81 = vector.load %arg4[%c0_61, %c0_62, %c40] : memref<1x4x64xf32, #tpu.memory_space<vmem>>, vector<1x4x8xf32>
    %82 = vector.shape_cast %81 : vector<1x4x8xf32> to vector<4x8xf32>
    %83 = vector.shape_cast %80 : vector<4x8xf32> to vector<1x4x8xf32>
    tpu.vector_store %arg4[%c0_61, %c0_62, %c40], %83 {strides = array<i32>} : memref<1x4x64xf32, #tpu.memory_space<vmem>>, vector<1x4x8xf32>,
    %c0_63 = arith.constant 0 : index
    %c0_64 = arith.constant 0 : index
    %c192 = arith.constant 192 : index
    %84 = tpu.strided_load %arg3[%c0_63, %c0_64, %c192] {strides = array<i32: 1, 1, 2>} : memref<1x4x256xf32, #tpu.memory_space<vmem>>, vector<1x4x8xf32>
    %85 = vector.shape_cast %84 : vector<1x4x8xf32> to vector<4x8xf32>
    %c0_65 = arith.constant 0 : index
    %c0_66 = arith.constant 0 : index
    %c193 = arith.constant 193 : index
    %86 = tpu.strided_load %arg3[%c0_65, %c0_66, %c193] {strides = array<i32: 1, 1, 2>} : memref<1x4x256xf32, #tpu.memory_space<vmem>>, vector<1x4x8xf32>
    %87 = vector.shape_cast %86 : vector<1x4x8xf32> to vector<4x8xf32>
    %88 = arith.maximumf %85, %87 : vector<4x8xf32>
    %c0_67 = arith.constant 0 : index
    %c0_68 = arith.constant 0 : index
    %c208 = arith.constant 208 : index
    %89 = tpu.strided_load %arg3[%c0_67, %c0_68, %c208] {strides = array<i32: 1, 1, 2>} : memref<1x4x256xf32, #tpu.memory_space<vmem>>, vector<1x4x8xf32>
    %90 = vector.shape_cast %89 : vector<1x4x8xf32> to vector<4x8xf32>
    %91 = arith.maximumf %88, %90 : vector<4x8xf32>
    %c0_69 = arith.constant 0 : index
    %c0_70 = arith.constant 0 : index
    %c209 = arith.constant 209 : index
    %92 = tpu.strided_load %arg3[%c0_69, %c0_70, %c209] {strides = array<i32: 1, 1, 2>} : memref<1x4x256xf32, #tpu.memory_space<vmem>>, vector<1x4x8xf32>
    %93 = vector.shape_cast %92 : vector<1x4x8xf32> to vector<4x8xf32>
    %94 = arith.maximumf %91, %93 : vector<4x8xf32>
    %c0_71 = arith.constant 0 : index
    %c0_72 = arith.constant 0 : index
    %c48_73 = arith.constant 48 : index
    %95 = vector.load %arg4[%c0_71, %c0_72, %c48_73] : memref<1x4x64xf32, #tpu.memory_space<vmem>>, vector<1x4x8xf32>
    %96 = vector.shape_cast %95 : vector<1x4x8xf32> to vector<4x8xf32>
    %97 = vector.shape_cast %94 : vector<4x8xf32> to vector<1x4x8xf32>
    tpu.vector_store %arg4[%c0_71, %c0_72, %c48_73], %97 {strides = array<i32>} : memref<1x4x64xf32, #tpu.memory_space<vmem>>, vector<1x4x8xf32>,
    %c0_74 = arith.constant 0 : index
    %c0_75 = arith.constant 0 : index
    %c224 = arith.constant 224 : index
    %98 = tpu.strided_load %arg3[%c0_74, %c0_75, %c224] {strides = array<i32: 1, 1, 2>} : memref<1x4x256xf32, #tpu.memory_space<vmem>>, vector<1x4x8xf32>
    %99 = vector.shape_cast %98 : vector<1x4x8xf32> to vector<4x8xf32>
    %c0_76 = arith.constant 0 : index
    %c0_77 = arith.constant 0 : index
    %c225 = arith.constant 225 : index
    %100 = tpu.strided_load %arg3[%c0_76, %c0_77, %c225] {strides = array<i32: 1, 1, 2>} : memref<1x4x256xf32, #tpu.memory_space<vmem>>, vector<1x4x8xf32>
    %101 = vector.shape_cast %100 : vector<1x4x8xf32> to vector<4x8xf32>
    %102 = arith.maximumf %99, %101 : vector<4x8xf32>
    %c0_78 = arith.constant 0 : index
    %c0_79 = arith.constant 0 : index
    %c240 = arith.constant 240 : index
    %103 = tpu.strided_load %arg3[%c0_78, %c0_79, %c240] {strides = array<i32: 1, 1, 2>} : memref<1x4x256xf32, #tpu.memory_space<vmem>>, vector<1x4x8xf32>
    %104 = vector.shape_cast %103 : vector<1x4x8xf32> to vector<4x8xf32>
    %105 = arith.maximumf %102, %104 : vector<4x8xf32>
    %c0_80 = arith.constant 0 : index
    %c0_81 = arith.constant 0 : index
    %c241 = arith.constant 241 : index
    %106 = tpu.strided_load %arg3[%c0_80, %c0_81, %c241] {strides = array<i32: 1, 1, 2>} : memref<1x4x256xf32, #tpu.memory_space<vmem>>, vector<1x4x8xf32>
    %107 = vector.shape_cast %106 : vector<1x4x8xf32> to vector<4x8xf32>
    %108 = arith.maximumf %105, %107 : vector<4x8xf32>
    %c0_82 = arith.constant 0 : index
    %c0_83 = arith.constant 0 : index
    %c56 = arith.constant 56 : index
    %109 = vector.load %arg4[%c0_82, %c0_83, %c56] : memref<1x4x64xf32, #tpu.memory_space<vmem>>, vector<1x4x8xf32>
    %110 = vector.shape_cast %109 : vector<1x4x8xf32> to vector<4x8xf32>
    %111 = vector.shape_cast %108 : vector<4x8xf32> to vector<1x4x8xf32>
    tpu.vector_store %arg4[%c0_82, %c0_83, %c56], %111 {strides = array<i32>} : memref<1x4x64xf32, #tpu.memory_space<vmem>>, vector<1x4x8xf32>,
    return
  }
  func.func @transform_0(%arg0: i32, %arg1: i32, %arg2: i32) -> (i32, i32, i32) {
    %c0_i32 = arith.constant 0 : i32
    return %arg0, %arg1, %arg2 : i32, i32, i32
  }
  func.func @transform_1(%arg0: i32, %arg1: i32, %arg2: i32) -> (i32, i32, i32) {
    %c0_i32 = arith.constant 0 : i32
    return %arg0, %arg1, %arg2 : i32, i32, i32
  }
}

module attributes {stable_mosaic.version = 11 : i64} {
  func.func @kernel(%arg0: i32, %arg1: i32, %arg2: i32, %arg3: memref<1x4x128xf32, #tpu.memory_space<vmem>>, %arg4: memref<1x4x64xf32, #tpu.memory_space<vmem>>) attributes {dimension_semantics = [#tpu.dimension_semantics<parallel>, #tpu.dimension_semantics<parallel>, #tpu.dimension_semantics<parallel>], iteration_bounds = array<i64: 2, 1, 1>, scalar_prefetch = 0 : i64, scratch_operands = 0 : i64, tpu.core_type = #tpu.core_type<tc>, window_params = [{transform_indices = @transform_0, window_bounds = array<i64: 1, 4, 128>}, {transform_indices = @transform_1, window_bounds = array<i64: 1, 4, 64>}]} {
    %c0 = arith.constant 0 : index
    %c0_0 = arith.constant 0 : index
    %c0_1 = arith.constant 0 : index
    %0 = vector.load %arg3[%c0, %c0_0, %c0_1] : memref<1x4x128xf32, #tpu.memory_space<vmem>>, vector<1x4x8xf32>
    %1 = vector.shape_cast %0 : vector<1x4x8xf32> to vector<4x8xf32>
    %c0_2 = arith.constant 0 : index
    %c0_3 = arith.constant 0 : index
    %c8 = arith.constant 8 : index
    %2 = vector.load %arg3[%c0_2, %c0_3, %c8] : memref<1x4x128xf32, #tpu.memory_space<vmem>>, vector<1x4x8xf32>
    %3 = vector.shape_cast %2 : vector<1x4x8xf32> to vector<4x8xf32>
    %4 = arith.maximumf %1, %3 : vector<4x8xf32>
    %c0_4 = arith.constant 0 : index
    %c0_5 = arith.constant 0 : index
    %c0_6 = arith.constant 0 : index
    %5 = vector.load %arg4[%c0_4, %c0_5, %c0_6] : memref<1x4x64xf32, #tpu.memory_space<vmem>>, vector<1x4x8xf32>
    %6 = vector.shape_cast %5 : vector<1x4x8xf32> to vector<4x8xf32>
    %7 = vector.shape_cast %4 : vector<4x8xf32> to vector<1x4x8xf32>
    tpu.vector_store %arg4[%c0_4, %c0_5, %c0_6], %7 {strides = array<i32>} : memref<1x4x64xf32, #tpu.memory_space<vmem>>, vector<1x4x8xf32>,
    %c0_7 = arith.constant 0 : index
    %c0_8 = arith.constant 0 : index
    %c16 = arith.constant 16 : index
    %8 = vector.load %arg3[%c0_7, %c0_8, %c16] : memref<1x4x128xf32, #tpu.memory_space<vmem>>, vector<1x4x8xf32>
    %9 = vector.shape_cast %8 : vector<1x4x8xf32> to vector<4x8xf32>
    %c0_9 = arith.constant 0 : index
    %c0_10 = arith.constant 0 : index
    %c24 = arith.constant 24 : index
    %10 = vector.load %arg3[%c0_9, %c0_10, %c24] : memref<1x4x128xf32, #tpu.memory_space<vmem>>, vector<1x4x8xf32>
    %11 = vector.shape_cast %10 : vector<1x4x8xf32> to vector<4x8xf32>
    %12 = arith.maximumf %9, %11 : vector<4x8xf32>
    %c0_11 = arith.constant 0 : index
    %c0_12 = arith.constant 0 : index
    %c8_13 = arith.constant 8 : index
    %13 = vector.load %arg4[%c0_11, %c0_12, %c8_13] : memref<1x4x64xf32, #tpu.memory_space<vmem>>, vector<1x4x8xf32>
    %14 = vector.shape_cast %13 : vector<1x4x8xf32> to vector<4x8xf32>
    %15 = vector.shape_cast %12 : vector<4x8xf32> to vector<1x4x8xf32>
    tpu.vector_store %arg4[%c0_11, %c0_12, %c8_13], %15 {strides = array<i32>} : memref<1x4x64xf32, #tpu.memory_space<vmem>>, vector<1x4x8xf32>,
    %c0_14 = arith.constant 0 : index
    %c0_15 = arith.constant 0 : index
    %c32 = arith.constant 32 : index
    %16 = vector.load %arg3[%c0_14, %c0_15, %c32] : memref<1x4x128xf32, #tpu.memory_space<vmem>>, vector<1x4x8xf32>
    %17 = vector.shape_cast %16 : vector<1x4x8xf32> to vector<4x8xf32>
    %c0_16 = arith.constant 0 : index
    %c0_17 = arith.constant 0 : index
    %c40 = arith.constant 40 : index
    %18 = vector.load %arg3[%c0_16, %c0_17, %c40] : memref<1x4x128xf32, #tpu.memory_space<vmem>>, vector<1x4x8xf32>
    %19 = vector.shape_cast %18 : vector<1x4x8xf32> to vector<4x8xf32>
    %20 = arith.maximumf %17, %19 : vector<4x8xf32>
    %c0_18 = arith.constant 0 : index
    %c0_19 = arith.constant 0 : index
    %c16_20 = arith.constant 16 : index
    %21 = vector.load %arg4[%c0_18, %c0_19, %c16_20] : memref<1x4x64xf32, #tpu.memory_space<vmem>>, vector<1x4x8xf32>
    %22 = vector.shape_cast %21 : vector<1x4x8xf32> to vector<4x8xf32>
    %23 = vector.shape_cast %20 : vector<4x8xf32> to vector<1x4x8xf32>
    tpu.vector_store %arg4[%c0_18, %c0_19, %c16_20], %23 {strides = array<i32>} : memref<1x4x64xf32, #tpu.memory_space<vmem>>, vector<1x4x8xf32>,
    %c0_21 = arith.constant 0 : index
    %c0_22 = arith.constant 0 : index
    %c48 = arith.constant 48 : index
    %24 = vector.load %arg3[%c0_21, %c0_22, %c48] : memref<1x4x128xf32, #tpu.memory_space<vmem>>, vector<1x4x8xf32>
    %25 = vector.shape_cast %24 : vector<1x4x8xf32> to vector<4x8xf32>
    %c0_23 = arith.constant 0 : index
    %c0_24 = arith.constant 0 : index
    %c56 = arith.constant 56 : index
    %26 = vector.load %arg3[%c0_23, %c0_24, %c56] : memref<1x4x128xf32, #tpu.memory_space<vmem>>, vector<1x4x8xf32>
    %27 = vector.shape_cast %26 : vector<1x4x8xf32> to vector<4x8xf32>
    %28 = arith.maximumf %25, %27 : vector<4x8xf32>
    %c0_25 = arith.constant 0 : index
    %c0_26 = arith.constant 0 : index
    %c24_27 = arith.constant 24 : index
    %29 = vector.load %arg4[%c0_25, %c0_26, %c24_27] : memref<1x4x64xf32, #tpu.memory_space<vmem>>, vector<1x4x8xf32>
    %30 = vector.shape_cast %29 : vector<1x4x8xf32> to vector<4x8xf32>
    %31 = vector.shape_cast %28 : vector<4x8xf32> to vector<1x4x8xf32>
    tpu.vector_store %arg4[%c0_25, %c0_26, %c24_27], %31 {strides = array<i32>} : memref<1x4x64xf32, #tpu.memory_space<vmem>>, vector<1x4x8xf32>,
    %c0_28 = arith.constant 0 : index
    %c0_29 = arith.constant 0 : index
    %c64 = arith.constant 64 : index
    %32 = vector.load %arg3[%c0_28, %c0_29, %c64] : memref<1x4x128xf32, #tpu.memory_space<vmem>>, vector<1x4x8xf32>
    %33 = vector.shape_cast %32 : vector<1x4x8xf32> to vector<4x8xf32>
    %c0_30 = arith.constant 0 : index
    %c0_31 = arith.constant 0 : index
    %c72 = arith.constant 72 : index
    %34 = vector.load %arg3[%c0_30, %c0_31, %c72] : memref<1x4x128xf32, #tpu.memory_space<vmem>>, vector<1x4x8xf32>
    %35 = vector.shape_cast %34 : vector<1x4x8xf32> to vector<4x8xf32>
    %36 = arith.maximumf %33, %35 : vector<4x8xf32>
    %c0_32 = arith.constant 0 : index
    %c0_33 = arith.constant 0 : index
    %c32_34 = arith.constant 32 : index
    %37 = vector.load %arg4[%c0_32, %c0_33, %c32_34] : memref<1x4x64xf32, #tpu.memory_space<vmem>>, vector<1x4x8xf32>
    %38 = vector.shape_cast %37 : vector<1x4x8xf32> to vector<4x8xf32>
    %39 = vector.shape_cast %36 : vector<4x8xf32> to vector<1x4x8xf32>
    tpu.vector_store %arg4[%c0_32, %c0_33, %c32_34], %39 {strides = array<i32>} : memref<1x4x64xf32, #tpu.memory_space<vmem>>, vector<1x4x8xf32>,
    %c0_35 = arith.constant 0 : index
    %c0_36 = arith.constant 0 : index
    %c80 = arith.constant 80 : index
    %40 = vector.load %arg3[%c0_35, %c0_36, %c80] : memref<1x4x128xf32, #tpu.memory_space<vmem>>, vector<1x4x8xf32>
    %41 = vector.shape_cast %40 : vector<1x4x8xf32> to vector<4x8xf32>
    %c0_37 = arith.constant 0 : index
    %c0_38 = arith.constant 0 : index
    %c88 = arith.constant 88 : index
    %42 = vector.load %arg3[%c0_37, %c0_38, %c88] : memref<1x4x128xf32, #tpu.memory_space<vmem>>, vector<1x4x8xf32>
    %43 = vector.shape_cast %42 : vector<1x4x8xf32> to vector<4x8xf32>
    %44 = arith.maximumf %41, %43 : vector<4x8xf32>
    %c0_39 = arith.constant 0 : index
    %c0_40 = arith.constant 0 : index
    %c40_41 = arith.constant 40 : index
    %45 = vector.load %arg4[%c0_39, %c0_40, %c40_41] : memref<1x4x64xf32, #tpu.memory_space<vmem>>, vector<1x4x8xf32>
    %46 = vector.shape_cast %45 : vector<1x4x8xf32> to vector<4x8xf32>
    %47 = vector.shape_cast %44 : vector<4x8xf32> to vector<1x4x8xf32>
    tpu.vector_store %arg4[%c0_39, %c0_40, %c40_41], %47 {strides = array<i32>} : memref<1x4x64xf32, #tpu.memory_space<vmem>>, vector<1x4x8xf32>,
    %c0_42 = arith.constant 0 : index
    %c0_43 = arith.constant 0 : index
    %c96 = arith.constant 96 : index
    %48 = vector.load %arg3[%c0_42, %c0_43, %c96] : memref<1x4x128xf32, #tpu.memory_space<vmem>>, vector<1x4x8xf32>
    %49 = vector.shape_cast %48 : vector<1x4x8xf32> to vector<4x8xf32>
    %c0_44 = arith.constant 0 : index
    %c0_45 = arith.constant 0 : index
    %c104 = arith.constant 104 : index
    %50 = vector.load %arg3[%c0_44, %c0_45, %c104] : memref<1x4x128xf32, #tpu.memory_space<vmem>>, vector<1x4x8xf32>
    %51 = vector.shape_cast %50 : vector<1x4x8xf32> to vector<4x8xf32>
    %52 = arith.maximumf %49, %51 : vector<4x8xf32>
    %c0_46 = arith.constant 0 : index
    %c0_47 = arith.constant 0 : index
    %c48_48 = arith.constant 48 : index
    %53 = vector.load %arg4[%c0_46, %c0_47, %c48_48] : memref<1x4x64xf32, #tpu.memory_space<vmem>>, vector<1x4x8xf32>
    %54 = vector.shape_cast %53 : vector<1x4x8xf32> to vector<4x8xf32>
    %55 = vector.shape_cast %52 : vector<4x8xf32> to vector<1x4x8xf32>
    tpu.vector_store %arg4[%c0_46, %c0_47, %c48_48], %55 {strides = array<i32>} : memref<1x4x64xf32, #tpu.memory_space<vmem>>, vector<1x4x8xf32>,
    %c0_49 = arith.constant 0 : index
    %c0_50 = arith.constant 0 : index
    %c112 = arith.constant 112 : index
    %56 = vector.load %arg3[%c0_49, %c0_50, %c112] : memref<1x4x128xf32, #tpu.memory_space<vmem>>, vector<1x4x8xf32>
    %57 = vector.shape_cast %56 : vector<1x4x8xf32> to vector<4x8xf32>
    %c0_51 = arith.constant 0 : index
    %c0_52 = arith.constant 0 : index
    %c120 = arith.constant 120 : index
    %58 = vector.load %arg3[%c0_51, %c0_52, %c120] : memref<1x4x128xf32, #tpu.memory_space<vmem>>, vector<1x4x8xf32>
    %59 = vector.shape_cast %58 : vector<1x4x8xf32> to vector<4x8xf32>
    %60 = arith.maximumf %57, %59 : vector<4x8xf32>
    %c0_53 = arith.constant 0 : index
    %c0_54 = arith.constant 0 : index
    %c56_55 = arith.constant 56 : index
    %61 = vector.load %arg4[%c0_53, %c0_54, %c56_55] : memref<1x4x64xf32, #tpu.memory_space<vmem>>, vector<1x4x8xf32>
    %62 = vector.shape_cast %61 : vector<1x4x8xf32> to vector<4x8xf32>
    %63 = vector.shape_cast %60 : vector<4x8xf32> to vector<1x4x8xf32>
    tpu.vector_store %arg4[%c0_53, %c0_54, %c56_55], %63 {strides = array<i32>} : memref<1x4x64xf32, #tpu.memory_space<vmem>>, vector<1x4x8xf32>,
    return
  }
  func.func @transform_0(%arg0: i32, %arg1: i32, %arg2: i32) -> (i32, i32, i32) {
    %c0_i32 = arith.constant 0 : i32
    return %arg0, %arg1, %arg2 : i32, i32, i32
  }
  func.func @transform_1(%arg0: i32, %arg1: i32, %arg2: i32) -> (i32, i32, i32) {
    %c0_i32 = arith.constant 0 : i32
    return %arg0, %arg1, %arg2 : i32, i32, i32
  }
}

</mosaic_0001>

<llo_original>
// kernel: tpu_custom_call.1
$region0: #{tpu_custom_call.1}
  #allocation0 [shape = 'u32[]', space=smem, size = 0x4, offset = 0x4, fixed_abs, tag = 'smem constant byte address 0x4 - core index']
  #allocation1 [shape = 'u32[72,128]{1,0:T(1,128)}', space=vmem, size = 0x9000, scoped, tag = 'internal scratch']
  %s0 = inlined_call_operand.hbm [shape: f32[2,4,128], index: 0, kind: input, shape index: {}]
  %s1 = inlined_call_operand.hbm [shape: f32[2,4,64], index: 1, kind: output, shape index: {}]
  %s2 = sld [smem:[#allocation0]]
  $region41: #{tpu_custom_call.1} parent=0
    _
  %s4 = ssub.s32 1, %s2
  %s5 = scalar_select 0, %s4, %s2
  $region1: #{tpu_custom_call.1} parent=0
    #allocation2 [shape = 'u8[4096]{0}', space=vmem, size = 0x1000, scoped, tag = 'input window, operand 0']
    #allocation3 [shape = 's32[2]{0}', space=sflag, size = 0x8, scoped, tag = 'scoped memory for tpu_custom_call.1']
    #allocation4 [shape = 's32[2]{0}', space=sflag, size = 0x8, scoped, tag = 'scoped memory for tpu_custom_call.1']
    #allocation5 [shape = 'u8[4096]{0}', space=vmem, size = 0x1000, scoped, tag = 'output window, operand 0']
    %6 = vsyncpa [#allocation3], 0
    %s7 = scalar_lea.sflag [#allocation3], 1
    %8 = vsyncpa %s7, 0
    %9 = vsyncpa [#allocation4], 0
    %s10 = scalar_lea.sflag [#allocation4], 1
    %11 = vsyncpa %s10, 0
    loop: start=0, step=1, limit=4
    $region2: #{tpu_custom_call.1} parent=1 // loop_pre_header
      _
    $region3: #{tpu_custom_call.1} parent=1 // loop_header
      %s13 = sphi 0, %s17
      %p14 = scmp.ge.s32.totalorder %s13, 4
      %s20 = sphi 0, %s39
      %s21 = sphi 0, %s35
      %s22 = sphi 0, %s31
      %s23 = sphi 0, %s20
      %s24 = sphi 0, %s21
      %s25 = sphi 0, %s22
      %s26 = sphi 0, %s23
      %s27 = sphi 0, %s24
      %s28 = sphi 0, %s25
      %s46 = sphi 0, %s48
      %s49 = sphi 0, %s46
      %s50 = sphi 0, %s49
      %s66 = sphi 0, %s50
      %s76 = sphi 0, %s78
      %s79 = sphi 0, %s76
      %s80 = sphi 0, %s79
      %s96 = sphi 0, %s80
    $region4: #{tpu_custom_call.1} parent=1 // loop_header_branch
      %16 = sbr.rel (%p14) target = $region8
    $region5: #{tpu_custom_call.1} parent=1 // loop_body
      %s18 = ssub.s32 %s13, 1
      %s19 = ssub.s32 %s13, 2
      %s29 = sadd.s32 1, %s22
      %p30 = scmp.ge.s32.totalorder %s29, 1
      %s31 = scalar_select %p30, 0, %s29
      %s32 = sadd.s32 1, %s21
      %s33 = scalar_select %p30, %s32, %s21
      %p34 = scmp.ge.s32.totalorder %s33, 1
      %s35 = scalar_select %p34, 0, %s33
      %s36 = sadd.s32 1, %s20
      %s37 = scalar_select %p34, %s36, %s20
      %p38 = scmp.ge.s32.totalorder %s37, 2
      %s39 = scalar_select %p38, 0, %s37
      %s40 = ssub.s32 %s20, %s39
      %s41 = ssub.s32 %s21, %s35
      %s42 = sor.u32 %s40, %s41
      %s43 = ssub.s32 %s22, %s31
      %s44 = sor.u32 %s42, %s43
      %p45 = scmp.eq.s32.totalorder %s44, 0
      %s47 = sadd.s32 %s46, 1
      %s48 = scalar_select %p45, %s46, %s47
      %p51 = pneg %p45
      %p52 = scmp.eq.s32.totalorder %s13, 1
      %p53 = por %p51, %p52
      %p54 = scmp.ne.s32.totalorder %s46, %s49
      %p55 = scmp.eq.s32.totalorder %s13, 0
      %p56 = por %p54, %p55
      %p57 = scmp.ne.s32.totalorder %s46, %s49
      %p58 = scmp.eq.s32.totalorder %s18, 1
      %p59 = por %p57, %p58
      %p60 = scmp.ne.s32.totalorder %s49, %s50
      %p61 = scmp.eq.s32.totalorder %s18, 0
      %p62 = por %p60, %p61
      %p63 = scmp.ne.s32.totalorder %s49, %s50
      %p64 = scmp.eq.s32.totalorder %s19, 1
      %p65 = por %p63, %p64
      %p67 = scmp.ne.s32.totalorder %s50, %s66
      %p68 = scmp.eq.s32.totalorder %s19, 0
      %p69 = por %p67, %p68
      %s70 = ssub.s32 %s20, %s39
      %s71 = ssub.s32 %s21, %s35
      %s72 = sor.u32 %s70, %s71
      %s73 = ssub.s32 %s22, %s31
      %s74 = sor.u32 %s72, %s73
      %p75 = scmp.eq.s32.totalorder %s74, 0
      %s77 = sadd.s32 %s76, 1
      %s78 = scalar_select %p75, %s76, %s77
      %p81 = pneg %p75
      %p82 = scmp.eq.s32.totalorder %s13, 1
      %p83 = por %p81, %p82
      %p84 = scmp.ne.s32.totalorder %s76, %s79
      %p85 = scmp.eq.s32.totalorder %s13, 0
      %p86 = por %p84, %p85
      %p87 = scmp.ne.s32.totalorder %s76, %s79
      %p88 = scmp.eq.s32.totalorder %s18, 1
      %p89 = por %p87, %p88
      %p90 = scmp.ne.s32.totalorder %s79, %s80
      %p91 = scmp.eq.s32.totalorder %s18, 0
      %p92 = por %p90, %p91
      %p93 = scmp.ne.s32.totalorder %s79, %s80
      %p94 = scmp.eq.s32.totalorder %s19, 1
      %p95 = por %p93, %p94
      %p97 = scmp.ne.s32.totalorder %s80, %s96
      %p98 = scmp.eq.s32.totalorder %s19, 0
      %p99 = por %p97, %p98
      %p100 = scmp.le.s32.totalorder 1, %s13
      %p101 = scmp.lt.s32.totalorder %s13, 3
      %p102 = pnand %p100, %p101
      %p103 = pneg %p102
      // Predicated region
      $region9: #{tpu_custom_call.1} parent=5 // pred_check
        _
      $region10: #{tpu_custom_call.1} parent=5 // pred_check_branch
        %105 = sbr.rel (%p102) target = $region12
      $region11: #{tpu_custom_call.1} parent=5 // pred_region
        %s106 = ssub.s32 %s13, 1
      $region12: #{tpu_custom_call.1} parent=5 // pred_fallthru
        _
      %p107 = scmp.lt.s32.totalorder %s13, 2
      // Predicated region
      $region13: #{tpu_custom_call.1} parent=5 // pred_check
        %p108 = pneg %p107
      $region14: #{tpu_custom_call.1} parent=5 // pred_check_branch
        %110 = sbr.rel (%p108) target = $region16
      $region15: #{tpu_custom_call.1} parent=5 // pred_region
        // Predicated region
        $region17: #{tpu_custom_call.1} parent=15 // pred_check
          %p111 = pneg %p56
        $region18: #{tpu_custom_call.1} parent=15 // pred_check_branch
          %113 = sbr.rel (%p111) target = $region20
        $region19: #{tpu_custom_call.1} parent=15 // pred_region
          %s114 = sand.u32 %s46, 1
          %s115 = scalar_lea.sflag [#allocation3], %s114
          %s116 = sand.u32 %s46, 1
          %s117 = smul.addr %s116, 4
          %s118 = scalar_lea.vmem [#allocation2], %s117
          %120 = vsyncadd %s115, 0
          %s121 = sadd.s32 %s22, %s21
          %s122 = sadd.s32 %s121, %s20
          %s123 = smul.addr %s122, 4
          %s124 = scalar_lea.hbm %s0, %s123
          %s126 = sshll.u32 %s124, 4
          %s127 = int_to_ptr.hbm [resolvable:$true] %s126
          %s128 = sshll.u32 %s118, 4
          %s129 = int_to_ptr.vmem [resolvable:$true] %s128
          %131 = dma.hbm_to_vmem [thread:$0]  %s127, 64, %s129, %s115
        $region20: #{tpu_custom_call.1} parent=15 // pred_fallthru
          _
      $region16: #{tpu_custom_call.1} parent=5 // pred_fallthru
        _
      %p132 = scmp.le.s32.totalorder 1, %s13
      %p133 = scmp.lt.s32.totalorder %s13, 3
      %p134 = pnand %p132, %p133
      %p135 = pneg %p134
      // Predicated region
      $region21: #{tpu_custom_call.1} parent=5 // pred_check
        _
      $region22: #{tpu_custom_call.1} parent=5 // pred_check_branch
        %137 = sbr.rel (%p134) target = $region24
      $region23: #{tpu_custom_call.1} parent=5 // pred_region
        %s138 = ssub.s32 %s13, 1
        %s139 = sand.u32 %s49, 1
        %s140 = scalar_lea.sflag [#allocation3], %s139
        %s141 = sand.u32 %s49, 1
        %s142 = smul.addr %s141, 4
        %s143 = scalar_lea.vmem [#allocation2], %s142
        // Predicated region
        $region25: #{tpu_custom_call.1} parent=23 // pred_check
          %p144 = pneg %p62
        $region26: #{tpu_custom_call.1} parent=23 // pred_check_branch
          %146 = sbr.rel (%p144) target = $region28
        $region27: #{tpu_custom_call.1} parent=23 // pred_region
          %148 = dma.done %s140, 64
        $region28: #{tpu_custom_call.1} parent=23 // pred_fallthru
          _
        %s149 = sand.u32 %s49, 1
        %s150 = scalar_lea.sflag [#allocation3], %s149
        %s151 = sand.u32 %s49, 1
        %s152 = smul.addr %s151, 4
        %s153 = scalar_lea.vmem [#allocation2], %s152
        %p154 = pneg %p62
        %p155 = pneg %p59
        %p156 = pneg %p92
        %p157 = pneg %p89
        %s158 = sand.u32 %s79, 1
        %s159 = scalar_lea.sflag [#allocation4], %s158
        %s160 = sand.u32 %s79, 1
        %s161 = smul.addr %s160, 4
        %s162 = scalar_lea.vmem [#allocation5], %s161
        %v163 = vld [vmem:[%s143] sm:$0xf]
        %165 = vrot.lane.b32.xlu0 %v163, 120
        %v166 = vpop.permute.xlu0 %165
        %v168 = vmax.f32 %v163, %v166
        %vm169 = vcmask 60416
        %170 = vst.msk [vmem:[%s162] sm:$0xf] %vm169, %v168
        %v171 = vld [vmem:[%s143] sm:$0xf]
        %173 = vrot.lane.b32.xlu0 %v171, 120
        %v174 = vpop.permute.xlu0 %173
        %v176 = vmax.f32 %v171, %v174
        %178 = vrot.lane.b32.xlu0 %v176, 120
        %v179 = vpop.permute.xlu0 %178
        %vm181 = vcmask 126016
        %182 = vst.msk [vmem:[%s162] sm:$0xf] %vm181, %v179
        %v183 = vld [vmem:[%s143] sm:$0xf]
        %185 = vrot.lane.b32.xlu0 %v183, 120
        %v186 = vpop.permute.xlu0 %185
        %v188 = vmax.f32 %v183, %v186
        %190 = vrot.lane.b32.xlu0 %v188, 112
        %v191 = vpop.permute.xlu0 %190
        %vm193 = vcmask 191616
        %194 = vst.msk [vmem:[%s162] sm:$0xf] %vm193, %v191
        %v195 = vld [vmem:[%s143] sm:$0xf]
        %197 = vrot.lane.b32.xlu0 %v195, 120
        %v198 = vpop.permute.xlu0 %197
        %v200 = vmax.f32 %v195, %v198
        %202 = vrot.lane.b32.xlu0 %v200, 104
        %v203 = vpop.permute.xlu0 %202
        %vm205 = vcmask 257216
        %206 = vst.msk [vmem:[%s162] sm:$0xf] %vm205, %v203
        %v207 = vld [vmem:[%s143] sm:$0xf]
        %209 = vrot.lane.b32.xlu0 %v207, 120
        %v210 = vpop.permute.xlu0 %209
        %v212 = vmax.f32 %v207, %v210
        %214 = vrot.lane.b32.xlu0 %v212, 96
        %v215 = vpop.permute.xlu0 %214
        %vm217 = vcmask 322816
        %218 = vst.msk [vmem:[%s162] sm:$0xf] %vm217, %v215
        %v219 = vld [vmem:[%s143] sm:$0xf]
        %221 = vrot.lane.b32.xlu0 %v219, 120
        %v222 = vpop.permute.xlu0 %221
        %v224 = vmax.f32 %v219, %v222
        %226 = vrot.lane.b32.xlu0 %v224, 88
        %v227 = vpop.permute.xlu0 %226
        %vm229 = vcmask 388416
        %230 = vst.msk [vmem:[%s162] sm:$0xf] %vm229, %v227
        %v231 = vld [vmem:[%s143] sm:$0xf]
        %233 = vrot.lane.b32.xlu0 %v231, 120
        %v234 = vpop.permute.xlu0 %233
        %v236 = vmax.f32 %v231, %v234
        %238 = vrot.lane.b32.xlu0 %v236, 80
        %v239 = vpop.permute.xlu0 %238
        %vm241 = vcmask 454016
        %242 = vst.msk [vmem:[%s162] sm:$0xf] %vm241, %v239
        %v243 = vld [vmem:[%s143] sm:$0xf]
        %245 = vrot.lane.b32.xlu0 %v243, 120
        %v246 = vpop.permute.xlu0 %245
        %v248 = vmax.f32 %v243, %v246
        %250 = vrot.lane.b32.xlu0 %v248, 72
        %v251 = vpop.permute.xlu0 %250
        %vm253 = vcmask 519616
        %254 = vst.msk [vmem:[%s162] sm:$0xf] %vm253, %v251
        %s255 = sand.u32 %s79, 1
        %s256 = scalar_lea.sflag [#allocation4], %s255
        %s257 = sand.u32 %s79, 1
        %s258 = smul.addr %s257, 4
        %s259 = scalar_lea.vmem [#allocation5], %s258
        // Predicated region
        $region29: #{tpu_custom_call.1} parent=23 // pred_check
          %p260 = pneg %p89
        $region30: #{tpu_custom_call.1} parent=23 // pred_check_branch
          %262 = sbr.rel (%p260) target = $region32
        $region31: #{tpu_custom_call.1} parent=23 // pred_region
          %264 = vsyncadd %s256, 0
          %s265 = sadd.s32 %s25, %s24
          %s266 = sadd.s32 %s265, %s23
          %s267 = smul.addr %s266, 4
          %s268 = scalar_lea.hbm %s1, %s267
          %s270 = sshll.u32 %s259, 4
          %s271 = int_to_ptr.vmem [resolvable:$true] %s270
          %s272 = sshll.u32 %s268, 4
          %s273 = int_to_ptr.hbm [resolvable:$true] %s272
          %275 = dma.vmem_to_hbm [thread:$0]  %s271, 64, %s273, %s256
        $region32: #{tpu_custom_call.1} parent=23 // pred_fallthru
          _
      $region24: #{tpu_custom_call.1} parent=5 // pred_fallthru
        _
      %p276 = scmp.le.s32.totalorder 2, %s13
      // Predicated region
      $region33: #{tpu_custom_call.1} parent=5 // pred_check
        %p277 = pneg %p276
      $region34: #{tpu_custom_call.1} parent=5 // pred_check_branch
        %279 = sbr.rel (%p277) target = $region36
      $region35: #{tpu_custom_call.1} parent=5 // pred_region
        %s280 = ssub.s32 %s13, 2
        // Predicated region
        $region37: #{tpu_custom_call.1} parent=35 // pred_check
          %p281 = pneg %p95
        $region38: #{tpu_custom_call.1} parent=35 // pred_check_branch
          %283 = sbr.rel (%p281) target = $region40
        $region39: #{tpu_custom_call.1} parent=35 // pred_region
          %s284 = sand.u32 %s80, 1
          %s285 = scalar_lea.sflag [#allocation4], %s284
          %s286 = sand.u32 %s80, 1
          %s287 = smul.addr %s286, 4
          %s288 = scalar_lea.vmem [#allocation5], %s287
          %290 = dma.done %s285, 64
        $region40: #{tpu_custom_call.1} parent=35 // pred_fallthru
          _
      $region36: #{tpu_custom_call.1} parent=5 // pred_fallthru
        _
    $region6: #{tpu_custom_call.1} parent=1 // loop_footer
      %s17 = sadd.s32 1, %s13
    $region7: #{tpu_custom_call.1} parent=1 // loop_footer_branch
      %12 = sbr.rel target = $region3
    $region8: #{tpu_custom_call.1} parent=1 // loop_exit
      _
    %291 = vsyncpa [#allocation3], 1
    %s292 = scalar_lea.sflag [#allocation3], 1
    %293 = vsyncpa %s292, 1
    %294 = vsyncpa [#allocation4], 1
    %s295 = scalar_lea.sflag [#allocation4], 1
    %296 = vsyncpa %s295, 1

</llo_original>
